<compile_context>
chip_gen: v6e
topology: v6e:2x2x1
jax: 0.10.0
libtpu: 0.0.40
codegen_flags: <defaults>
</compile_context>

<pallas_src>
import functools

import jax
import jax.numpy as jnp
from jax.experimental import pallas as pl
from jax.experimental.pallas import tpu as pltpu

EPS = 1e-5
IN_F = 10      # fc1 in_features
HID = 50       # fc1 out_features / BN features
OUT_F = 2      # fc2 out_features


def _round_up(x, m):
    return (x + m - 1) // m * m


# --------- Pass 1: full-batch BN stats -> BN folded into fc1 (w1', b1') -------
def _bn_stats_kernel(x_ref, w1_ref, b1_ref, gamma_ref, beta_ref,
                     w1p_ref, b1p_ref, sum_sc, sq_sc, *, batch, block_b, ragged):
    i = pl.program_id(0)
    last = pl.num_programs(0) - 1

    @pl.when(i == 0)
    def _():
        sum_sc[...] = jnp.zeros_like(sum_sc)
        sq_sc[...] = jnp.zeros_like(sq_sc)

    # fc1 on this batch tile.
    h = jnp.dot(x_ref[...], w1_ref[...],
                preferred_element_type=jnp.float32) + b1_ref[...]

    def accumulate(mvec):
        # Batch reduction on the MXU: (1, bb) @ (bb, HID).
        sum_sc[...] += jnp.dot(mvec, h, preferred_element_type=jnp.float32)
        sq_sc[...] += jnp.dot(mvec, h * h, preferred_element_type=jnp.float32)

    if not ragged:
        # B % bb == 0 (compile-time known): every row of every tile is valid.
        accumulate(jnp.ones((1, block_b), jnp.float32))
    else:
        @pl.when(i != last)
        def _():
            accumulate(jnp.ones((1, block_b), jnp.float32))

        @pl.when(i == last)
        def _():
            # Only the ragged last tile pays for the iota/compare/cast mask.
            row = jax.lax.broadcasted_iota(jnp.int32, (1, block_b), 1) + i * block_b
            accumulate((row < batch).astype(jnp.float32))

    @pl.when(i == last)
    def _():
        inv_b = 1.0 / batch                        # compile-time constant
        mean = sum_sc[...] * inv_b
        var = sq_sc[...] * inv_b - mean * mean     # biased variance (training mode)
        scale = gamma_ref[...] * jax.lax.rsqrt(var + EPS)
        shift = beta_ref[...] - mean * scale
        # Fold BN into fc1 so pass 2 is just dot -> relu -> dot.
        w1p_ref[...] = w1_ref[...] * scale
        b1p_ref[...] = b1_ref[...] * scale + shift


# --------- Pass 2: x @ w1' + b1' -> ReLU -> fc2 --------------------------------
def _fwd_kernel(x_ref, w1p_ref, b1p_ref, w2_ref, b2_ref, o_ref):
    h = jnp.dot(x_ref[...], w1p_ref[...],
                preferred_element_type=jnp.float32) + b1p_ref[...]
    h = jnp.maximum(h, 0.0)
    out = jnp.dot(h, w2_ref[...], preferred_element_type=jnp.float32) + b2_ref[...]
    o_ref[...] = out.astype(o_ref.dtype)           # (bb, 2): block last dim == full dim


def normalization_model_forward(x, params, *, block_b=2048):
    """x: (B, 10) float32. Returns (B, 2) float32."""
    w1, b1, gamma, beta, w2, b2 = (
        params["w1"], params["b1"], params["gamma"],
        params["beta"], params["w2"], params["b2"],
    )
    B = x.shape[0]

    # Batch tile: multiple of 8 sublanes, capped at block_b.
    bb = _round_up(min(block_b, B), 8)
    # v7x megacore: keep at least 2 grid steps on the parallel pass-2 axis when
    # the batch is large enough to benefit from both TensorCores.
    if B > 1024 and B <= 2 * bb:
        bb = _round_up(pl.cdiv(B, 2), 8)
    B_pad = _round_up(B, bb)
    nb = B_pad // bb
    ragged = (B % bb) != 0
    x_pad = x if B_pad == B else jnp.pad(x, ((0, B_pad - B), (0, 0)))

    def const(shape):
        return pl.BlockSpec(shape, lambda i: (0,) * len(shape))

    # Pass 1: exact full-batch statistics, BN folded into fc1 weights.
    w1p, b1p = pl.pallas_call(
        functools.partial(_bn_stats_kernel, batch=B, block_b=bb, ragged=ragged),
        out_shape=(jax.ShapeDtypeStruct((IN_F, HID), jnp.float32),
                   jax.ShapeDtypeStruct((1, HID), jnp.float32)),
        grid=(nb,),
        in_specs=[pl.BlockSpec((bb, IN_F), lambda i: (i, 0)),
                  const((IN_F, HID)),
                  const((1, HID)),
                  const((1, HID)),
                  const((1, HID))],
        out_specs=[const((IN_F, HID)),
                   const((1, HID))],
        scratch_shapes=[pltpu.VMEM((1, HID), jnp.float32),
                        pltpu.VMEM((1, HID), jnp.float32)],
        compiler_params=pltpu.CompilerParams(
            dimension_semantics=("arbitrary",)),
    )(x_pad, w1, b1, gamma, beta)

    # Pass 2: forward with folded BN; batch axis fully parallel (v7x megacore).
    out_pad = pl.pallas_call(
        _fwd_kernel,
        out_shape=jax.ShapeDtypeStruct((B_pad, OUT_F), jnp.float32),
        grid=(nb,),
        in_specs=[pl.BlockSpec((bb, IN_F), lambda i: (i, 0)),
                  const((IN_F, HID)),
                  const((1, HID)),
                  const((HID, OUT_F)),
                  const((1, OUT_F))],
        out_specs=pl.BlockSpec((bb, OUT_F), lambda i: (i, 0)),
        compiler_params=pltpu.CompilerParams(
            dimension_semantics=("parallel",)),
    )(x_pad, w1p, b1p, w2, b2)

    return out_pad if B_pad == B else out_pad[:B]


def init_params(key):
    """Deterministic init mimicking PyTorch Linear default (uniform ±1/sqrt(fan_in))."""
    k1, k2, k3, k4 = jax.random.split(key, 4)
    bound1 = 1.0 / jnp.sqrt(10.0)
    bound2 = 1.0 / jnp.sqrt(50.0)
    return {
        "w1": jax.random.uniform(k1, (IN_F, HID), jnp.float32, -bound1, bound1),
        "b1": jax.random.uniform(k2, (1, HID), jnp.float32, -bound1, bound1),
        "gamma": jnp.ones((1, HID), jnp.float32),   # BatchNorm1d weight
        "beta": jnp.zeros((1, HID), jnp.float32),   # BatchNorm1d bias
        "w2": jax.random.uniform(k3, (HID, OUT_F), jnp.float32, -bound2, bound2),
        "b2": jax.random.uniform(k4, (1, OUT_F), jnp.float32, -bound2, bound2),
    }


def _reference(x, p):
    h = x @ p["w1"] + p["b1"]
    mean = jnp.mean(h, axis=0, keepdims=True)
    var = jnp.mean((h - mean) ** 2, axis=0, keepdims=True)
    h = (h - mean) / jnp.sqrt(var + EPS)
    h = h * p["gamma"] + p["beta"]
    h = jnp.maximum(h, 0.0)
    return h @ p["w2"] + p["b2"]


if __name__ == "__main__":
    key = jax.random.PRNGKey(0)
    kx, kx2, kp = jax.random.split(key, 3)
    params = init_params(kp)

    # Small demo shape (single grid step, no ragged tile).
    batch = 8
    x = jax.random.normal(kx, (batch, IN_F), dtype=jnp.float32)
    out = jax.block_until_ready(normalization_model_forward(x, params))
    ref = _reference(x, params)
    assert out.shape == (batch, OUT_F), out.shape
    assert jnp.allclose(out, ref, atol=1e-4, rtol=1e-4), "mismatch vs JAX reference (B=8)"

    # Gridded path: multiple batch tiles + ragged last tile (row masking in pass 1).
    batch2 = 300
    x2 = jax.random.normal(kx2, (batch2, IN_F), dtype=jnp.float32)
    out2 = jax.block_until_ready(
        normalization_model_forward(x2, params, block_b=128))
    ref2 = _reference(x2, params)
    assert out2.shape == (batch2, OUT_F), out2.shape
    assert jnp.allclose(out2, ref2, atol=1e-4, rtol=1e-4), "mismatch vs JAX reference (B=300)"

    print("KERNEL_OK")
</pallas_src>

<mosaic_0001>
module attributes {stable_mosaic.version = 11 : i64} {
  func.func @_bn_stats_kernel(%arg0: i32, %arg1: memref<8x10xf32, #tpu.memory_space<vmem>>, %arg2: memref<10x50xf32, #tpu.memory_space<vmem>>, %arg3: memref<1x50xf32, #tpu.memory_space<vmem>>, %arg4: memref<1x50xf32, #tpu.memory_space<vmem>>, %arg5: memref<1x50xf32, #tpu.memory_space<vmem>>, %arg6: memref<10x50xf32, #tpu.memory_space<vmem>>, %arg7: memref<1x50xf32, #tpu.memory_space<vmem>>, %arg8: memref<1x50xf32, #tpu.memory_space<vmem>>, %arg9: memref<1x50xf32, #tpu.memory_space<vmem>>) attributes {dimension_semantics = [#tpu.dimension_semantics<arbitrary>], iteration_bounds = array<i64: 1>, scalar_prefetch = 0 : i64, scratch_operands = 2 : i64, tpu.core_type = #tpu.core_type<tc>, window_params = [{transform_indices = @transform_0, window_bounds = array<i64: 8, 10>}, {pipeline_mode = #tpu.pipeline_mode<synchronous>, transform_indices = @transform_1, window_bounds = array<i64: 10, 50>}, {pipeline_mode = #tpu.pipeline_mode<synchronous>, transform_indices = @transform_2, window_bounds = array<i64: 1, 50>}, {pipeline_mode = #tpu.pipeline_mode<synchronous>, transform_indices = @transform_3, window_bounds = array<i64: 1, 50>}, {pipeline_mode = #tpu.pipeline_mode<synchronous>, transform_indices = @transform_4, window_bounds = array<i64: 1, 50>}, {pipeline_mode = #tpu.pipeline_mode<synchronous>, transform_indices = @transform_5, window_bounds = array<i64: 10, 50>}, {pipeline_mode = #tpu.pipeline_mode<synchronous>, transform_indices = @transform_6, window_bounds = array<i64: 1, 50>}]} {
    %c0_i32 = arith.constant 0 : i32
    %0 = arith.cmpi eq, %arg0, %c0_i32 : i32
    %1 = arith.extui %0 : i1 to i32
    %c0_i32_0 = arith.constant 0 : i32
    %2 = arith.cmpi ne, %1, %c0_i32_0 : i32
    scf.if %2 {
      %cst_19 = arith.constant 0.000000e+00 : f32
      %22 = vector.broadcast %cst_19 : f32 to vector<1x50xf32>
      %c0_20 = arith.constant 0 : index
      %c0_21 = arith.constant 0 : index
      %23 = vector.load %arg8[%c0_20, %c0_21] : memref<1x50xf32, #tpu.memory_space<vmem>>, vector<1x50xf32>
      tpu.vector_store %arg8[%c0_20, %c0_21], %22 {strides = array<i32>} : memref<1x50xf32, #tpu.memory_space<vmem>>, vector<1x50xf32>,
      %cst_22 = arith.constant 0.000000e+00 : f32
      %24 = vector.broadcast %cst_22 : f32 to vector<1x50xf32>
      %c0_23 = arith.constant 0 : index
      %c0_24 = arith.constant 0 : index
      %25 = vector.load %arg9[%c0_23, %c0_24] : memref<1x50xf32, #tpu.memory_space<vmem>>, vector<1x50xf32>
      tpu.vector_store %arg9[%c0_23, %c0_24], %24 {strides = array<i32>} : memref<1x50xf32, #tpu.memory_space<vmem>>, vector<1x50xf32>,
    } else {
    }
    %c0 = arith.constant 0 : index
    %c0_1 = arith.constant 0 : index
    %3 = vector.load %arg1[%c0, %c0_1] : memref<8x10xf32, #tpu.memory_space<vmem>>, vector<8x10xf32>
    %c0_2 = arith.constant 0 : index
    %c0_3 = arith.constant 0 : index
    %4 = vector.load %arg2[%c0_2, %c0_3] : memref<10x50xf32, #tpu.memory_space<vmem>>, vector<10x50xf32>
    %cst = arith.constant dense<0.000000e+00> : vector<8x50xf32>
    %5 = tpu.matmul %3, %4, %cst {dimension_numbers = #tpu.dot_dimension_numbers<[1], [0], [0], [1], [0, 0, 1, 1], [], []>} : vector<8x10xf32>, vector<10x50xf32>, vector<8x50xf32> -> vector<8x50xf32>
    %c0_4 = arith.constant 0 : index
    %c0_5 = arith.constant 0 : index
    %6 = vector.load %arg3[%c0_4, %c0_5] : memref<1x50xf32, #tpu.memory_space<vmem>>, vector<1x50xf32>
    %7 = vector.broadcast %6 : vector<1x50xf32> to vector<8x50xf32>
    %8 = arith.addf %5, %7 : vector<8x50xf32>
    %cst_6 = arith.constant 1.000000e+00 : f32
    %9 = vector.broadcast %cst_6 : f32 to vector<1x8xf32>
    %c0_7 = arith.constant 0 : index
    %c0_8 = arith.constant 0 : index
    %10 = vector.load %arg8[%c0_7, %c0_8] : memref<1x50xf32, #tpu.memory_space<vmem>>, vector<1x50xf32>
    %cst_9 = arith.constant dense<0.000000e+00> : vector<1x50xf32>
    %11 = tpu.matmul %9, %8, %cst_9 {dimension_numbers = #tpu.dot_dimension_numbers<[1], [0], [0], [1], [0, 0, 1, 1], [], []>} : vector<1x8xf32>, vector<8x50xf32>, vector<1x50xf32> -> vector<1x50xf32>
    %12 = arith.addf %10, %11 : vector<1x50xf32>
    %c0_10 = arith.constant 0 : index
    %c0_11 = arith.constant 0 : index
    %13 = vector.load %arg8[%c0_10, %c0_11] : memref<1x50xf32, #tpu.memory_space<vmem>>, vector<1x50xf32>
    tpu.vector_store %arg8[%c0_10, %c0_11], %12 {strides = array<i32>} : memref<1x50xf32, #tpu.memory_space<vmem>>, vector<1x50xf32>,
    %c0_12 = arith.constant 0 : index
    %c0_13 = arith.constant 0 : index
    %14 = vector.load %arg9[%c0_12, %c0_13] : memref<1x50xf32, #tpu.memory_space<vmem>>, vector<1x50xf32>
    %15 = arith.mulf %8, %8 : vector<8x50xf32>
    %cst_14 = arith.constant dense<0.000000e+00> : vector<1x50xf32>
    %16 = tpu.matmul %9, %15, %cst_14 {dimension_numbers = #tpu.dot_dimension_numbers<[1], [0], [0], [1], [0, 0, 1, 1], [], []>} : vector<1x8xf32>, vector<8x50xf32>, vector<1x50xf32> -> vector<1x50xf32>
    %17 = arith.addf %14, %16 : vector<1x50xf32>
    %c0_15 = arith.constant 0 : index
    %c0_16 = arith.constant 0 : index
    %18 = vector.load %arg9[%c0_15, %c0_16] : memref<1x50xf32, #tpu.memory_space<vmem>>, vector<1x50xf32>
    tpu.vector_store %arg9[%c0_15, %c0_16], %17 {strides = array<i32>} : memref<1x50xf32, #tpu.memory_space<vmem>>, vector<1x50xf32>,
    %c0_i32_17 = arith.constant 0 : i32
    %19 = arith.cmpi eq, %arg0, %c0_i32_17 : i32
    %20 = arith.extui %19 : i1 to i32
    %c0_i32_18 = arith.constant 0 : i32
    %21 = arith.cmpi ne, %20, %c0_i32_18 : i32
    scf.if %21 {
      %c0_19 = arith.constant 0 : index
      %c0_20 = arith.constant 0 : index
      %22 = vector.load %arg8[%c0_19, %c0_20] : memref<1x50xf32, #tpu.memory_space<vmem>>, vector<1x50xf32>
      %cst_21 = arith.constant 1.250000e-01 : f32
      %23 = vector.broadcast %cst_21 : f32 to vector<1x50xf32>
      %24 = arith.mulf %22, %23 : vector<1x50xf32>
      %c0_22 = arith.constant 0 : index
      %c0_23 = arith.constant 0 : index
      %25 = vector.load %arg9[%c0_22, %c0_23] : memref<1x50xf32, #tpu.memory_space<vmem>>, vector<1x50xf32>
      %cst_24 = arith.constant 1.250000e-01 : f32
      %26 = vector.broadcast %cst_24 : f32 to vector<1x50xf32>
      %27 = arith.mulf %25, %26 : vector<1x50xf32>
      %28 = arith.mulf %24, %24 : vector<1x50xf32>
      %29 = arith.subf %27, %28 : vector<1x50xf32>
      %c0_25 = arith.constant 0 : index
      %c0_26 = arith.constant 0 : index
      %30 = vector.load %arg4[%c0_25, %c0_26] : memref<1x50xf32, #tpu.memory_space<vmem>>, vector<1x50xf32>
      %cst_27 = arith.constant 9.99999974E-6 : f32
      %31 = vector.broadcast %cst_27 : f32 to vector<1x50xf32>
      %32 = arith.addf %29, %31 : vector<1x50xf32>
      %33 = math.rsqrt %32 : vector<1x50xf32>
      %34 = arith.mulf %30, %33 : vector<1x50xf32>
      %c0_28 = arith.constant 0 : index
      %c0_29 = arith.constant 0 : index
      %35 = vector.load %arg5[%c0_28, %c0_29] : memref<1x50xf32, #tpu.memory_space<vmem>>, vector<1x50xf32>
      %36 = arith.mulf %24, %34 : vector<1x50xf32>
      %37 = arith.subf %35, %36 : vector<1x50xf32>
      %c0_30 = arith.constant 0 : index
      %c0_31 = arith.constant 0 : index
      %38 = vector.load %arg2[%c0_30, %c0_31] : memref<10x50xf32, #tpu.memory_space<vmem>>, vector<10x50xf32>
      %39 = vector.broadcast %34 : vector<1x50xf32> to vector<10x50xf32>
      %40 = arith.mulf %38, %39 : vector<10x50xf32>
      %c0_32 = arith.constant 0 : index
      %c0_33 = arith.constant 0 : index
      %41 = vector.load %arg6[%c0_32, %c0_33] : memref<10x50xf32, #tpu.memory_space<vmem>>, vector<10x50xf32>
      tpu.vector_store %arg6[%c0_32, %c0_33], %40 {strides = array<i32>} : memref<10x50xf32, #tpu.memory_space<vmem>>, vector<10x50xf32>,
      %c0_34 = arith.constant 0 : index
      %c0_35 = arith.constant 0 : index
      %42 = vector.load %arg3[%c0_34, %c0_35] : memref<1x50xf32, #tpu.memory_space<vmem>>, vector<1x50xf32>
      %43 = arith.mulf %42, %34 : vector<1x50xf32>
      %44 = arith.addf %43, %37 : vector<1x50xf32>
      %c0_36 = arith.constant 0 : index
      %c0_37 = arith.constant 0 : index
      %45 = vector.load %arg7[%c0_36, %c0_37] : memref<1x50xf32, #tpu.memory_space<vmem>>, vector<1x50xf32>
      tpu.vector_store %arg7[%c0_36, %c0_37], %44 {strides = array<i32>} : memref<1x50xf32, #tpu.memory_space<vmem>>, vector<1x50xf32>,
    } else {
    }
    return
  }
  func.func @transform_0(%arg0: i32) -> (i32, i32) {
    %c0_i32 = arith.constant 0 : i32
    %c0_i32_0 = arith.constant 0 : i32
    return %arg0, %c0_i32 : i32, i32
  }
  func.func @transform_1(%arg0: i32) -> (i32, i32) {
    %c0_i32 = arith.constant 0 : i32
    %c0_i32_0 = arith.constant 0 : i32
    %c0_i32_1 = arith.constant 0 : i32
    return %c0_i32, %c0_i32_0 : i32, i32
  }
  func.func @transform_2(%arg0: i32) -> (i32, i32) {
    %c0_i32 = arith.constant 0 : i32
    %c0_i32_0 = arith.constant 0 : i32
    %c0_i32_1 = arith.constant 0 : i32
    return %c0_i32, %c0_i32_0 : i32, i32
  }
  func.func @transform_3(%arg0: i32) -> (i32, i32) {
    %c0_i32 = arith.constant 0 : i32
    %c0_i32_0 = arith.constant 0 : i32
    %c0_i32_1 = arith.constant 0 : i32
    return %c0_i32, %c0_i32_0 : i32, i32
  }
  func.func @transform_4(%arg0: i32) -> (i32, i32) {
    %c0_i32 = arith.constant 0 : i32
    %c0_i32_0 = arith.constant 0 : i32
    %c0_i32_1 = arith.constant 0 : i32
    return %c0_i32, %c0_i32_0 : i32, i32
  }
  func.func @transform_5(%arg0: i32) -> (i32, i32) {
    %c0_i32 = arith.constant 0 : i32
    %c0_i32_0 = arith.constant 0 : i32
    %c0_i32_1 = arith.constant 0 : i32
    return %c0_i32, %c0_i32_0 : i32, i32
  }
  func.func @transform_6(%arg0: i32) -> (i32, i32) {
    %c0_i32 = arith.constant 0 : i32
    %c0_i32_0 = arith.constant 0 : i32
    %c0_i32_1 = arith.constant 0 : i32
    return %c0_i32, %c0_i32_0 : i32, i32
  }
}

</mosaic_0001>

<llo_original>
// kernel: tpu_custom_call.1
$region0: #{tpu_custom_call.1}
  #allocation0 [shape = 'u32[]', space=smem, size = 0x4, offset = 0x4, fixed_abs, tag = 'smem constant byte address 0x4 - core index']
  #allocation1 [shape = 'u32[144,128]{1,0:T(1,128)}', space=vmem, size = 0x12000, scoped, tag = 'internal scratch']
  #allocation2 [shape = 'f32[1,50]{1,0:T(1,128)}', space=vmem, size = 0x200, scoped, tag = 'scratch operand']
  #allocation3 [shape = 'f32[1,50]{1,0:T(1,128)}', space=vmem, size = 0x200, scoped, tag = 'scratch operand']
  %s0 = inlined_call_operand.hbm [shape: f32[8,10], index: 0, kind: input, shape index: {}]
  %s1 = inlined_call_operand.hbm [shape: f32[10,50], index: 1, kind: input, shape index: {}]
  %s2 = inlined_call_operand.vmem [shape: f32[1,50], index: 2, kind: input, shape index: {}]
  %s3 = inlined_call_operand.vmem [shape: f32[1,50], index: 3, kind: input, shape index: {}]
  %s4 = inlined_call_operand.vmem [shape: f32[1,50], index: 4, kind: input, shape index: {}]
  %s5 = inlined_call_operand.hbm [shape: f32[10,50], index: 5, kind: output, shape index: {0}]
  %s6 = inlined_call_operand.hbm [shape: f32[1,50], index: 6, kind: output, shape index: {1}]
  %7 = xla_tuple %s5, %s6
  %s8 = sld [smem:[#allocation0]]
  $region54: #{tpu_custom_call.1} parent=0
    _
  %s10 = ssub.s32 1, %s8
  %s11 = scalar_select 0, %s10, %s8
  $region1: #{tpu_custom_call.1} parent=0
    #allocation4 [shape = 'u8[4096]{0}', space=vmem, size = 0x1000, scoped, tag = 'input window, operand 0, single buffered']
    #allocation5 [shape = 's32[1]{0}', space=sflag, size = 0x4, scoped, tag = 'scoped memory for tpu_custom_call.1']
    #allocation6 [shape = 's32[1]{0}', space=sflag, size = 0x4, scoped, tag = 'scoped memory for tpu_custom_call.1']
    #allocation7 [shape = 'u8[8192]{0}', space=vmem, size = 0x2000, scoped, tag = 'input window, operand 1, single buffered']
    #allocation8 [shape = 's32[1]{0}', space=sflag, size = 0x4, scoped, tag = 'scoped memory for tpu_custom_call.1']
    #allocation9 [shape = 'u8[8192]{0}', space=vmem, size = 0x2000, scoped, tag = 'output window, operand 0, single buffered']
    #allocation10 [shape = 'u8[512]{0}', space=vmem, size = 0x400, scoped, tag = 'output window, operand 1, single buffered']
    #allocation11 [shape = 's32[1]{0}', space=sflag, size = 0x4, scoped, tag = 'scoped memory for tpu_custom_call.1']
    %12 = vsyncpa [#allocation5], 0
    %13 = vsyncpa [#allocation8], 0
    %14 = vsyncpa [#allocation6], 0
    %15 = vsyncpa [#allocation11], 0
    // Predicated region
    $region2: #{tpu_custom_call.1} parent=1 // pred_check
      _
    $region3: #{tpu_custom_call.1} parent=1 // pred_check_branch
      %17 = sbr.rel (0) target = $region5
    $region4: #{tpu_custom_call.1} parent=1 // pred_region
      %s19 = ssub.s32 128, 128
      %20 = vsyncadd [#allocation5], %s19
      %s22 = sshll.u32 [#allocation4], 4
      %s23 = int_to_ptr.vmem [resolvable:$true] %s22
      %25 = dma.hbm_to_vmem [thread:$0]  %s0, 128, %s23, [#allocation5]
    $region5: #{tpu_custom_call.1} parent=1 // pred_fallthru
      _
    // Predicated region
    $region6: #{tpu_custom_call.1} parent=1 // pred_check
      _
    $region7: #{tpu_custom_call.1} parent=1 // pred_check_branch
      %27 = sbr.rel (0) target = $region9
    $region8: #{tpu_custom_call.1} parent=1 // pred_region
      %s29 = ssub.s32 256, 256
      %30 = vsyncadd [#allocation8], %s29
      %s31 = sshll.u32 [#allocation7], 4
      %s32 = int_to_ptr.vmem [resolvable:$true] %s31
      %37 = dma.hbm_to_vmem [thread:$0]  %s1, 256, %s32, [#allocation8], 128, 128, 8
    $region9: #{tpu_custom_call.1} parent=1 // pred_fallthru
      _
    // Predicated region
    $region10: #{tpu_custom_call.1} parent=1 // pred_check
      _
    $region11: #{tpu_custom_call.1} parent=1 // pred_check_branch
      %39 = sbr.rel (0) target = $region13
    $region12: #{tpu_custom_call.1} parent=1 // pred_region
      _
    $region13: #{tpu_custom_call.1} parent=1 // pred_fallthru
      _
    // Predicated region
    $region14: #{tpu_custom_call.1} parent=1 // pred_check
      _
    $region15: #{tpu_custom_call.1} parent=1 // pred_check_branch
      %41 = sbr.rel (0) target = $region17
    $region16: #{tpu_custom_call.1} parent=1 // pred_region
      _
    $region17: #{tpu_custom_call.1} parent=1 // pred_fallthru
      _
    // Predicated region
    $region18: #{tpu_custom_call.1} parent=1 // pred_check
      _
    $region19: #{tpu_custom_call.1} parent=1 // pred_check_branch
      %43 = sbr.rel (0) target = $region21
    $region20: #{tpu_custom_call.1} parent=1 // pred_region
      _
    $region21: #{tpu_custom_call.1} parent=1 // pred_fallthru
      _
    // Predicated region
    $region22: #{tpu_custom_call.1} parent=1 // pred_check
      _
    $region23: #{tpu_custom_call.1} parent=1 // pred_check_branch
      %45 = sbr.rel (0) target = $region25
    $region24: #{tpu_custom_call.1} parent=1 // pred_region
      %46 = dma.done [#allocation5], 128
    $region25: #{tpu_custom_call.1} parent=1 // pred_fallthru
      _
    // Predicated region
    $region26: #{tpu_custom_call.1} parent=1 // pred_check
      _
    $region27: #{tpu_custom_call.1} parent=1 // pred_check_branch
      %48 = sbr.rel (0) target = $region29
    $region28: #{tpu_custom_call.1} parent=1 // pred_region
      %49 = dma.done [#allocation8], 256
    $region29: #{tpu_custom_call.1} parent=1 // pred_fallthru
      _
    %p50 = scmp.eq.s32.totalorder 0, 0
    // Predicated region
    $region30: #{tpu_custom_call.1} parent=1 // pred_check
      %p51 = pneg %p50
    $region31: #{tpu_custom_call.1} parent=1 // pred_check_branch
      %53 = sbr.rel (%p51) target = $region33
    $region32: #{tpu_custom_call.1} parent=1 // pred_region
      %vm54 = vcmask 401408
      %55 = vst.msk [vmem:[#allocation2] sm:$0x1] %vm54, 0.0
      %56 = vst.msk [vmem:[#allocation3] sm:$0x1] %vm54, 0.0
    $region33: #{tpu_custom_call.1} parent=1 // pred_fallthru
      _
    %v57 = vld [vmem:[#allocation4] sm:$0xff]
    %v58 = vld [vmem:[#allocation7] sm:$0xff]
    %v59 = vld [vmem:[#allocation7 + $0x8] sm:$0x3]
    %v60 = vld [vmem:[%s2] sm:$0x1]
    %v62 = vlaneseq
    %v63 = vshrl.u32 %v62, 7
    %v64 = vsub.s32 0, %v63
    %v65 = vrot.slane %v60, %v64
    %vm67 = vcmask 80896
    %v69 = vsel %vm67, %v57, 0
    %vm71 = vcmask 1041408
    %v73 = vsel %vm71, %v59, 0
    %75 = vmatprep.subr.mxu0 0.0
    %76 = vmatpush1.msra.mxu0 0.0
    %77 = vmatprep.subr.mxu0 0.0
    %78 = vmatpush1.msra.mxu0 0.0
    %79 = vmatprep.subr.mxu0 0.0
    %80 = vmatpush1.msra.mxu0 0.0
    %81 = vmatprep.subr.mxu0 0.0
    %82 = vmatpush1.msra.mxu0 0.0
    %83 = vmatprep.subr.mxu0 0.0
    %84 = vmatpush1.msra.mxu0 0.0
    %85 = vmatprep.subr.mxu0 0.0
    %86 = vmatpush1.msra.mxu0 0.0
    %87 = vmatprep.subr.mxu0 0.0
    %88 = vmatpush1.msra.mxu0 0.0
    %89 = vmatprep.subr.mxu0 0.0
    %90 = vmatpush1.msra.mxu0 0.0
    %91 = vmatprep.subr.mxu0 0.0
    %92 = vmatpush1.msra.mxu0 0.0
    %93 = vmatprep.subr.mxu0 0.0
    %94 = vmatpush1.msra.mxu0 0.0
    %95 = vmatprep.subr.mxu0 0.0
    %96 = vmatpush1.msra.mxu0 0.0
    %97 = vmatprep.subr.mxu0 0.0
    %98 = vmatpush1.msra.mxu0 0.0
    %99 = vmatprep.subr.mxu0 0.0
    %100 = vmatpush1.msra.mxu0 0.0
    %101 = vmatprep.subr.mxu0 0.0
    %102 = vmatpush1.msra.mxu0 0.0
    %103 = vmatprep.subr.mxu0 0.0
    %104 = vmatpush1.msra.mxu0 %v73
    %105 = vmatprep.subr.mxu0 0.0
    %106 = vmatpush1.msra.mxu0 %v58
    %107 = vmatprep.subr.mxu0 0.0
    %108 = vmatpush2.msra.mxu0 0.0
    %109 = vmatprep.subr.mxu0 0.0
    %110 = vmatpush2.msra.mxu0 0.0
    %111 = vmatprep.subr.mxu0 0.0
    %112 = vmatpush2.msra.mxu0 0.0
    %113 = vmatprep.subr.mxu0 0.0
    %114 = vmatpush2.msra.mxu0 0.0
    %115 = vmatprep.subr.mxu0 0.0
    %116 = vmatpush2.msra.mxu0 0.0
    %117 = vmatprep.subr.mxu0 0.0
    %118 = vmatpush2.msra.mxu0 0.0
    %119 = vmatprep.subr.mxu0 0.0
    %120 = vmatpush2.msra.mxu0 0.0
    %121 = vmatprep.subr.mxu0 0.0
    %122 = vmatpush2.msra.mxu0 0.0
    %123 = vmatprep.subr.mxu0 0.0
    %124 = vmatpush2.msra.mxu0 0.0
    %125 = vmatprep.subr.mxu0 0.0
    %126 = vmatpush2.msra.mxu0 0.0
    %127 = vmatprep.subr.mxu0 0.0
    %128 = vmatpush2.msra.mxu0 0.0
    %129 = vmatprep.subr.mxu0 0.0
    %130 = vmatpush2.msra.mxu0 0.0
    %131 = vmatprep.subr.mxu0 0.0
    %132 = vmatpush2.msra.mxu0 0.0
    %133 = vmatprep.subr.mxu0 0.0
    %134 = vmatpush2.msra.mxu0 0.0
    %135 = vmatprep.subr.mxu0 0.0
    %136 = vmatpush2.msra.mxu0 0.0
    %137 = vmatprep.subr.mxu0 0.0
    %138 = vmatpush2.msra.mxu0 0.0
    %139 = vmatprep.mubr.f32.mxu0 0.0
    %140 = vmatmul.mubr.f32.gmra.mxu0 %v69
    %v141 = vpop.f32.mrf.mxu0
    %v142 = vadd.f32 %v65, %v141
    %v143 = vpop.f32.mrf.mxu0
    %144 = vdwg.mxu0
    %v145 = vld [vmem:[#allocation2] sm:$0x1]
    %vm146 = vcmask 64512
    %v148 = vsel %vm146, 1.0, 0
    %150 = vmatprep.subr.mxu0 0.0
    %151 = vmatpush1.msra.mxu0 0.0
    %152 = vmatprep.subr.mxu0 0.0
    %153 = vmatpush1.msra.mxu0 0.0
    %154 = vmatprep.subr.mxu0 0.0
    %155 = vmatpush1.msra.mxu0 0.0
    %156 = vmatprep.subr.mxu0 0.0
    %157 = vmatpush1.msra.mxu0 0.0
    %158 = vmatprep.subr.mxu0 0.0
    %159 = vmatpush1.msra.mxu0 0.0
    %160 = vmatprep.subr.mxu0 0.0
    %161 = vmatpush1.msra.mxu0 0.0
    %162 = vmatprep.subr.mxu0 0.0
    %163 = vmatpush1.msra.mxu0 0.0
    %164 = vmatprep.subr.mxu0 0.0
    %165 = vmatpush1.msra.mxu0 0.0
    %166 = vmatprep.subr.mxu0 0.0
    %167 = vmatpush1.msra.mxu0 0.0
    %168 = vmatprep.subr.mxu0 0.0
    %169 = vmatpush1.msra.mxu0 0.0
    %170 = vmatprep.subr.mxu0 0.0
    %171 = vmatpush1.msra.mxu0 0.0
    %172 = vmatprep.subr.mxu0 0.0
    %173 = vmatpush1.msra.mxu0 0.0
    %174 = vmatprep.subr.mxu0 0.0
    %175 = vmatpush1.msra.mxu0 0.0
    %176 = vmatprep.subr.mxu0 0.0
    %177 = vmatpush1.msra.mxu0 0.0
    %178 = vmatprep.subr.mxu0 0.0
    %179 = vmatpush1.msra.mxu0 0.0
    %180 = vmatprep.subr.mxu0 0.0
    %181 = vmatpush1.msra.mxu0 %v142
    %182 = vmatprep.subr.mxu0 0.0
    %183 = vmatpush2.msra.mxu0 0.0
    %184 = vmatprep.subr.mxu0 0.0
    %185 = vmatpush2.msra.mxu0 0.0
    %186 = vmatprep.subr.mxu0 0.0
    %187 = vmatpush2.msra.mxu0 0.0
    %188 = vmatprep.subr.mxu0 0.0
    %189 = vmatpush2.msra.mxu0 0.0
    %190 = vmatprep.subr.mxu0 0.0
    %191 = vmatpush2.msra.mxu0 0.0
    %192 = vmatprep.subr.mxu0 0.0
    %193 = vmatpush2.msra.mxu0 0.0
    %194 = vmatprep.subr.mxu0 0.0
    %195 = vmatpush2.msra.mxu0 0.0
    %196 = vmatprep.subr.mxu0 0.0
    %197 = vmatpush2.msra.mxu0 0.0
    %198 = vmatprep.subr.mxu0 0.0
    %199 = vmatpush2.msra.mxu0 0.0
    %200 = vmatprep.subr.mxu0 0.0
    %201 = vmatpush2.msra.mxu0 0.0
    %202 = vmatprep.subr.mxu0 0.0
    %203 = vmatpush2.msra.mxu0 0.0
    %204 = vmatprep.subr.mxu0 0.0
    %205 = vmatpush2.msra.mxu0 0.0
    %206 = vmatprep.subr.mxu0 0.0
    %207 = vmatpush2.msra.mxu0 0.0
    %208 = vmatprep.subr.mxu0 0.0
    %209 = vmatpush2.msra.mxu0 0.0
    %210 = vmatprep.subr.mxu0 0.0
    %211 = vmatpush2.msra.mxu0 0.0
    %212 = vmatprep.subr.mxu0 0.0
    %213 = vmatpush2.msra.mxu0 0.0
    %214 = vmatprep.mubr.f32.mxu0 0.0
    %215 = vmatmul.mubr.f32.gmra.mxu0 %v148
    %v216 = vpop.f32.mrf.mxu0
    %v217 = vadd.f32 0.0, %v216
    %v218 = vpop.f32.mrf.mxu0
    %219 = vdwg.mxu0
    %v220 = vadd.f32 %v145, %v217
    %vm221 = vcmask 401408
    %222 = vst.msk [vmem:[#allocation2] sm:$0x1] %vm221, %v220
    %v223 = vld [vmem:[#allocation3] sm:$0x1]
    %v224 = vmul.f32 %v142, %v142
    %225 = vmatprep.subr.mxu0 0.0
    %226 = vmatpush1.msra.mxu0 0.0
    %227 = vmatprep.subr.mxu0 0.0
    %228 = vmatpush1.msra.mxu0 0.0
    %229 = vmatprep.subr.mxu0 0.0
    %230 = vmatpush1.msra.mxu0 0.0
    %231 = vmatprep.subr.mxu0 0.0
    %232 = vmatpush1.msra.mxu0 0.0
    %233 = vmatprep.subr.mxu0 0.0
    %234 = vmatpush1.msra.mxu0 0.0
    %235 = vmatprep.subr.mxu0 0.0
    %236 = vmatpush1.msra.mxu0 0.0
    %237 = vmatprep.subr.mxu0 0.0
    %238 = vmatpush1.msra.mxu0 0.0
    %239 = vmatprep.subr.mxu0 0.0
    %240 = vmatpush1.msra.mxu0 0.0
    %241 = vmatprep.subr.mxu0 0.0
    %242 = vmatpush1.msra.mxu0 0.0
    %243 = vmatprep.subr.mxu0 0.0
    %244 = vmatpush1.msra.mxu0 0.0
    %245 = vmatprep.subr.mxu0 0.0
    %246 = vmatpush1.msra.mxu0 0.0
    %247 = vmatprep.subr.mxu0 0.0
    %248 = vmatpush1.msra.mxu0 0.0
    %249 = vmatprep.subr.mxu0 0.0
    %250 = vmatpush1.msra.mxu0 0.0
    %251 = vmatprep.subr.mxu0 0.0
    %252 = vmatpush1.msra.mxu0 0.0
    %253 = vmatprep.subr.mxu0 0.0
    %254 = vmatpush1.msra.mxu0 0.0
    %255 = vmatprep.subr.mxu0 0.0
    %256 = vmatpush1.msra.mxu0 %v224
    %257 = vmatprep.subr.mxu0 0.0
    %258 = vmatpush2.msra.mxu0 0.0
    %259 = vmatprep.subr.mxu0 0.0
    %260 = vmatpush2.msra.mxu0 0.0
    %261 = vmatprep.subr.mxu0 0.0
    %262 = vmatpush2.msra.mxu0 0.0
    %263 = vmatprep.subr.mxu0 0.0
    %264 = vmatpush2.msra.mxu0 0.0
    %265 = vmatprep.subr.mxu0 0.0
    %266 = vmatpush2.msra.mxu0 0.0
    %267 = vmatprep.subr.mxu0 0.0
    %268 = vmatpush2.msra.mxu0 0.0
    %269 = vmatprep.subr.mxu0 0.0
    %270 = vmatpush2.msra.mxu0 0.0
    %271 = vmatprep.subr.mxu0 0.0
    %272 = vmatpush2.msra.mxu0 0.0
    %273 = vmatprep.subr.mxu0 0.0
    %274 = vmatpush2.msra.mxu0 0.0
    %275 = vmatprep.subr.mxu0 0.0
    %276 = vmatpush2.msra.mxu0 0.0
    %277 = vmatprep.subr.mxu0 0.0
    %278 = vmatpush2.msra.mxu0 0.0
    %279 = vmatprep.subr.mxu0 0.0
    %280 = vmatpush2.msra.mxu0 0.0
    %281 = vmatprep.subr.mxu0 0.0
    %282 = vmatpush2.msra.mxu0 0.0
    %283 = vmatprep.subr.mxu0 0.0
    %284 = vmatpush2.msra.mxu0 0.0
    %285 = vmatprep.subr.mxu0 0.0
    %286 = vmatpush2.msra.mxu0 0.0
    %287 = vmatprep.subr.mxu0 0.0
    %288 = vmatpush2.msra.mxu0 0.0
    %289 = vmatprep.mubr.f32.mxu0 0.0
    %290 = vmatmul.mubr.f32.gmra.mxu0 %v148
    %v291 = vpop.f32.mrf.mxu0
    %v292 = vadd.f32 0.0, %v291
    %v293 = vpop.f32.mrf.mxu0
    %294 = vdwg.mxu0
    %v295 = vadd.f32 %v223, %v292
    %296 = vst.msk [vmem:[#allocation3] sm:$0x1] %vm221, %v295
    // Predicated region
    $region34: #{tpu_custom_call.1} parent=1 // pred_check
      %p297 = pneg %p50
    $region35: #{tpu_custom_call.1} parent=1 // pred_check_branch
      %299 = sbr.rel (%p297) target = $region37
    $region36: #{tpu_custom_call.1} parent=1 // pred_region
      %v300 = vld [vmem:[#allocation2] sm:$0x1]
      %v301 = vmul.f32 %v300, 0.125
      %v302 = vld [vmem:[#allocation3] sm:$0x1]
      %v303 = vmul.f32 %v302, 0.125
      %v304 = vmul.f32 %v301, %v301
      %v305 = vsub.f32 %v303, %v304
      %v306 = vld [vmem:[%s3] sm:$0x1]
      %v307 = vadd.f32 %v305, 1e-05
      %v308 = vrsqrt.pop %v307
      %v309 = vmul.f32 %v306, %v308
      %v310 = vld [vmem:[%s4] sm:$0x1]
      %v311 = vmul.f32 %v301, %v309
      %v312 = vsub.f32 %v310, %v311
      %v313 = vld [vmem:[#allocation7] sm:$0xff]
      %v314 = vld [vmem:[#allocation7 + $0x8] sm:$0x3]
      %v316 = vlaneseq
      %v317 = vshrl.u32 %v316, 7
      %v318 = vsub.s32 0, %v317
      %v319 = vrot.slane %v309, %v318
      %v321 = vmul.f32 %v313, %v319
      %v322 = vmul.f32 %v314, %v319
      %vm323 = vcmask 408576
      %324 = vst.msk [vmem:[#allocation9] sm:$0xff] %vm323, %v321
      %vm325 = vcmask 402432
      %326 = vst.msk [vmem:[#allocation9 + $0x8] sm:$0x3] %vm325, %v322
      %v327 = vld [vmem:[%s2] sm:$0x1]
      %v328 = vmul.f32 %v327, %v309
      %v329 = vadd.f32 %v328, %v312
      %330 = vst.msk [vmem:[#allocation10] sm:$0x1] %vm221, %v329
    $region37: #{tpu_custom_call.1} parent=1 // pred_fallthru
      _
    // Predicated region
    $region38: #{tpu_custom_call.1} parent=1 // pred_check
      _
    $region39: #{tpu_custom_call.1} parent=1 // pred_check_branch
      %332 = sbr.rel (0) target = $region41
    $region40: #{tpu_custom_call.1} parent=1 // pred_region
      %s334 = ssub.s32 256, 256
      %335 = vsyncadd [#allocation6], %s334
      %s336 = sshll.u32 [#allocation9], 4
      %s337 = int_to_ptr.vmem [resolvable:$true] %s336
      %342 = dma.vmem_to_hbm [thread:$0]  %s337, 256, %s5, [#allocation6], 128, 128, 8
    $region41: #{tpu_custom_call.1} parent=1 // pred_fallthru
      _
    // Predicated region
    $region42: #{tpu_custom_call.1} parent=1 // pred_check
      _
    $region43: #{tpu_custom_call.1} parent=1 // pred_check_branch
      %344 = sbr.rel (0) target = $region45
    $region44: #{tpu_custom_call.1} parent=1 // pred_region
      %s346 = ssub.s32 16, 16
      %347 = vsyncadd [#allocation11], %s346
      %s349 = sshll.u32 [#allocation10], 4
      %s350 = int_to_ptr.vmem [resolvable:$true] %s349
      %352 = dma.vmem_to_hbm [thread:$0]  %s350, 16, %s6, [#allocation11]
    $region45: #{tpu_custom_call.1} parent=1 // pred_fallthru
      _
    // Predicated region
    $region46: #{tpu_custom_call.1} parent=1 // pred_check
      _
    $region47: #{tpu_custom_call.1} parent=1 // pred_check_branch
      %354 = sbr.rel (0) target = $region49
    $region48: #{tpu_custom_call.1} parent=1 // pred_region
      %355 = dma.done [#allocation6], 256
    $region49: #{tpu_custom_call.1} parent=1 // pred_fallthru
      _
    // Predicated region
    $region50: #{tpu_custom_call.1} parent=1 // pred_check
      _
    $region51: #{tpu_custom_call.1} parent=1 // pred_check_branch
      %357 = sbr.rel (0) target = $region53
    $region52: #{tpu_custom_call.1} parent=1 // pred_region
      %358 = dma.done [#allocation11], 16
    $region53: #{tpu_custom_call.1} parent=1 // pred_fallthru
      _
    %359 = vsyncpa [#allocation5], 1
    %360 = vsyncpa [#allocation8], 1
    %361 = vsyncpa [#allocation6], 1
    %362 = vsyncpa [#allocation11], 1

</llo_original>
